<compile_context>
chip_gen: v7x
topology: tpu7x:2x2x1
jax: 0.10.0
libtpu: 0.0.40
codegen_flags: <defaults>
</compile_context>

<pallas_src>
import jax
import jax.numpy as jnp
from jax.experimental import pallas as pl
from jax.experimental.pallas import tpu as pltpu


def _leaky_relu(h, slope=0.001):
    return jnp.where(h >= 0, h, slope * h)


def discriminator_kernel(x_ref,
                         w0_ref, b0_ref,
                         w1_ref, b1_ref,
                         w2_ref, b2_ref,
                         w3_ref, b3_ref,
                         o_ref):
    # Feature-major: x_ref is (2, Bt); activations are (features, Bt).
    x = x_ref[...]                                   # (2, Bt)
    w0 = w0_ref[...]                                 # (64, 2)

    # Layer 0: K=2 -> VPU broadcast-multiply-add (skip the MXU for a 2-deep dot).
    h0 = w0[:, 0:1] * x[0:1, :] + w0[:, 1:2] * x[1:2, :] + b0_ref[...]   # (64, Bt)
    h0 = _leaky_relu(h0)

    # Layers 1 & 2: real matmuls -> MXU.
    h1 = _leaky_relu(
        jnp.dot(w1_ref[...], h0, preferred_element_type=jnp.float32) + b1_ref[...])  # (32, Bt)
    h2 = _leaky_relu(
        jnp.dot(w2_ref[...], h1, preferred_element_type=jnp.float32) + b2_ref[...])  # (16, Bt)

    # Layer 3: out=1 -> VPU multiply + sublane (XLU) reduce instead of an N=1 matmul.
    logits = jnp.sum(w3_ref[...] * h2, axis=0, keepdims=True) + b3_ref[...]           # (1, Bt)

    # Sigmoid: exp on EUP, approx reciprocal also on EUP (otherwise-idle slot).
    o_ref[...] = pl.reciprocal(1.0 + jnp.exp(-logits), approx=True)


def discriminator_net(x, params, *, batch_tile=512):
    """x: (B, 2) float32. params: weights stored (in, out), biases (1, out)."""
    B, F = x.shape
    assert F == 2

    # Lane constraint: block last dim must be a multiple of 128.
    batch_tile = max(128, (batch_tile // 128) * 128)
    B_pad = ((B + batch_tile - 1) // batch_tile) * batch_tile
    n_tiles = B_pad // batch_tile

    # Feature-major (batch-on-lanes) input, zero-padded rows are harmless.
    x_fm = jnp.zeros((F, B_pad), jnp.float32).at[:, :B].set(x.astype(jnp.float32).T)

    # Repack parameters for the feature-major kernel: W as (out, in), b as (out, 1).
    w0, b0 = params["w0"].T, params["b0"].T          # (64, 2), (64, 1)
    w1, b1 = params["w1"].T, params["b1"].T          # (32, 64), (32, 1)
    w2, b2 = params["w2"].T, params["b2"].T          # (16, 32), (16, 1)
    w3, b3 = params["w3"], params["b3"].T            # (16, 1),  (1, 1)

    def full(shape):
        # Whole (tiny) array resident per step; constant index map.
        return pl.BlockSpec(shape, lambda i: (0, 0))

    out_fm = pl.pallas_call(
        discriminator_kernel,
        out_shape=jax.ShapeDtypeStruct((1, B_pad), jnp.float32),
        grid_spec=pltpu.PrefetchScalarGridSpec(
            num_scalar_prefetch=0,
            grid=(n_tiles,),
            in_specs=[
                pl.BlockSpec((F, batch_tile), lambda i: (0, i)),  # x tile (lane-dense)
                full(w0.shape), full(b0.shape),
                full(w1.shape), full(b1.shape),
                full(w2.shape), full(b2.shape),
                full(w3.shape), full(b3.shape),
            ],
            out_specs=pl.BlockSpec((1, batch_tile), lambda i: (0, i)),  # lane-dense out
        ),
        compiler_params=pltpu.CompilerParams(
            dimension_semantics=("parallel",)),
    )(x_fm, w0, b0, w1, b1, w2, b2, w3, b3)

    # Back to PyTorch layout (B, 1), dropping batch padding.
    return out_fm[0, :B].reshape(B, 1)


def init_params(key):
    """Deterministic synthetic init matching nn.Linear shapes (Kaiming-uniform-like)."""
    dims = [(2, 64), (64, 32), (32, 16), (16, 1)]
    params = {}
    keys = jax.random.split(key, 2 * len(dims))
    for idx, (fan_in, fan_out) in enumerate(dims):
        bound = 1.0 / jnp.sqrt(jnp.float32(fan_in))
        w = jax.random.uniform(keys[2 * idx], (fan_in, fan_out),
                               minval=-bound, maxval=bound, dtype=jnp.float32)
        b = jax.random.uniform(keys[2 * idx + 1], (1, fan_out),
                               minval=-bound, maxval=bound, dtype=jnp.float32)
        params[f"w{idx}"] = w
        params[f"b{idx}"] = b
    return params


def reference_forward(x, params):
    h = x
    for idx in range(3):
        h = _leaky_relu(h @ params[f"w{idx}"] + params[f"b{idx}"])
    return jax.nn.sigmoid(h @ params["w3"] + params["b3"])


if __name__ == "__main__":
    key = jax.random.PRNGKey(0)
    pkey, xkey = jax.random.split(key)
    params = init_params(pkey)

    # Non-multiple-of-128 batch to exercise padding; tile of 128 -> 3 grid steps.
    batch = 300
    x = jax.random.normal(xkey, (batch, 2), dtype=jnp.float32)

    out = discriminator_net(x, params, batch_tile=128)
    out = jax.block_until_ready(out)

    ref = reference_forward(x, params)
    assert out.shape == (batch, 1)
    # approx reciprocal in the sigmoid is ~1e-4 relative; 1e-3 is comfortably tight.
    assert jnp.allclose(out, ref, atol=1e-3, rtol=1e-3)

    print("KERNEL_OK")
</pallas_src>

<mosaic_0001>
module attributes {stable_mosaic.version = 11 : i64} {
  func.func @discriminator_kernel(%arg0: i32, %arg1: memref<2x128xf32, #tpu.memory_space<vmem>>, %arg2: memref<64x2xf32, #tpu.memory_space<vmem>>, %arg3: memref<64x1xf32, #tpu.memory_space<vmem>>, %arg4: memref<32x64xf32, #tpu.memory_space<vmem>>, %arg5: memref<32x1xf32, #tpu.memory_space<vmem>>, %arg6: memref<16x32xf32, #tpu.memory_space<vmem>>, %arg7: memref<16x1xf32, #tpu.memory_space<vmem>>, %arg8: memref<16x1xf32, #tpu.memory_space<vmem>>, %arg9: memref<1x1xf32, #tpu.memory_space<vmem>>, %arg10: memref<1x128xf32, #tpu.memory_space<vmem>>) attributes {dimension_semantics = [#tpu.dimension_semantics<parallel>], iteration_bounds = array<i64: 3>, scalar_prefetch = 0 : i64, scratch_operands = 0 : i64, tpu.core_type = #tpu.core_type<tc>, window_params = [{transform_indices = @transform_0, window_bounds = array<i64: 2, 128>}, {pipeline_mode = #tpu.pipeline_mode<synchronous>, transform_indices = @transform_1, window_bounds = array<i64: 64, 2>}, {pipeline_mode = #tpu.pipeline_mode<synchronous>, transform_indices = @transform_2, window_bounds = array<i64: 64, 1>}, {pipeline_mode = #tpu.pipeline_mode<synchronous>, transform_indices = @transform_3, window_bounds = array<i64: 32, 64>}, {pipeline_mode = #tpu.pipeline_mode<synchronous>, transform_indices = @transform_4, window_bounds = array<i64: 32, 1>}, {pipeline_mode = #tpu.pipeline_mode<synchronous>, transform_indices = @transform_5, window_bounds = array<i64: 16, 32>}, {pipeline_mode = #tpu.pipeline_mode<synchronous>, transform_indices = @transform_6, window_bounds = array<i64: 16, 1>}, {pipeline_mode = #tpu.pipeline_mode<synchronous>, transform_indices = @transform_7, window_bounds = array<i64: 16, 1>}, {pipeline_mode = #tpu.pipeline_mode<synchronous>, transform_indices = @transform_8, window_bounds = array<i64: 1, 1>}, {transform_indices = @transform_9, window_bounds = array<i64: 1, 128>}]} {
    %c0 = arith.constant 0 : index
    %c0_0 = arith.constant 0 : index
    %0 = vector.load %arg1[%c0, %c0_0] : memref<2x128xf32, #tpu.memory_space<vmem>>, vector<2x128xf32>
    %c0_1 = arith.constant 0 : index
    %c0_2 = arith.constant 0 : index
    %1 = vector.load %arg2[%c0_1, %c0_2] : memref<64x2xf32, #tpu.memory_space<vmem>>, vector<64x2xf32>
    %2 = vector.extract_strided_slice %1 {offsets = [0, 0], sizes = [64, 1], strides = [1, 1]} : vector<64x2xf32> to vector<64x1xf32>
    %3 = vector.extract_strided_slice %0 {offsets = [0, 0], sizes = [1, 128], strides = [1, 1]} : vector<2x128xf32> to vector<1x128xf32>
    %4 = vector.broadcast %2 : vector<64x1xf32> to vector<64x128xf32>
    %5 = vector.broadcast %3 : vector<1x128xf32> to vector<64x128xf32>
    %6 = arith.mulf %4, %5 : vector<64x128xf32>
    %7 = vector.extract_strided_slice %1 {offsets = [0, 1], sizes = [64, 1], strides = [1, 1]} : vector<64x2xf32> to vector<64x1xf32>
    %8 = vector.extract_strided_slice %0 {offsets = [1, 0], sizes = [1, 128], strides = [1, 1]} : vector<2x128xf32> to vector<1x128xf32>
    %9 = vector.broadcast %7 : vector<64x1xf32> to vector<64x128xf32>
    %10 = vector.broadcast %8 : vector<1x128xf32> to vector<64x128xf32>
    %11 = arith.mulf %9, %10 : vector<64x128xf32>
    %12 = arith.addf %6, %11 : vector<64x128xf32>
    %c0_3 = arith.constant 0 : index
    %c0_4 = arith.constant 0 : index
    %13 = vector.load %arg3[%c0_3, %c0_4] : memref<64x1xf32, #tpu.memory_space<vmem>>, vector<64x1xf32>
    %14 = vector.broadcast %13 : vector<64x1xf32> to vector<64x128xf32>
    %15 = arith.addf %12, %14 : vector<64x128xf32>
    %cst = arith.constant 0.000000e+00 : f32
    %16 = vector.broadcast %cst : f32 to vector<64x128xf32>
    %17 = arith.cmpf oge, %15, %16 : vector<64x128xf32>
    %cst_5 = arith.constant 1.000000e-03 : f32
    %18 = vector.broadcast %cst_5 : f32 to vector<64x128xf32>
    %19 = arith.mulf %18, %15 : vector<64x128xf32>
    %20 = arith.select %17, %15, %19 : vector<64x128xi1>, vector<64x128xf32>
    %c0_6 = arith.constant 0 : index
    %c0_7 = arith.constant 0 : index
    %21 = vector.load %arg4[%c0_6, %c0_7] : memref<32x64xf32, #tpu.memory_space<vmem>>, vector<32x64xf32>
    %cst_8 = arith.constant dense<0.000000e+00> : vector<32x128xf32>
    %22 = tpu.matmul %21, %20, %cst_8 {dimension_numbers = #tpu.dot_dimension_numbers<[1], [0], [0], [1], [0, 0, 1, 1], [], []>} : vector<32x64xf32>, vector<64x128xf32>, vector<32x128xf32> -> vector<32x128xf32>
    %c0_9 = arith.constant 0 : index
    %c0_10 = arith.constant 0 : index
    %23 = vector.load %arg5[%c0_9, %c0_10] : memref<32x1xf32, #tpu.memory_space<vmem>>, vector<32x1xf32>
    %24 = vector.broadcast %23 : vector<32x1xf32> to vector<32x128xf32>
    %25 = arith.addf %22, %24 : vector<32x128xf32>
    %cst_11 = arith.constant 0.000000e+00 : f32
    %26 = vector.broadcast %cst_11 : f32 to vector<32x128xf32>
    %27 = arith.cmpf oge, %25, %26 : vector<32x128xf32>
    %cst_12 = arith.constant 1.000000e-03 : f32
    %28 = vector.broadcast %cst_12 : f32 to vector<32x128xf32>
    %29 = arith.mulf %28, %25 : vector<32x128xf32>
    %30 = arith.select %27, %25, %29 : vector<32x128xi1>, vector<32x128xf32>
    %c0_13 = arith.constant 0 : index
    %c0_14 = arith.constant 0 : index
    %31 = vector.load %arg6[%c0_13, %c0_14] : memref<16x32xf32, #tpu.memory_space<vmem>>, vector<16x32xf32>
    %cst_15 = arith.constant dense<0.000000e+00> : vector<16x128xf32>
    %32 = tpu.matmul %31, %30, %cst_15 {dimension_numbers = #tpu.dot_dimension_numbers<[1], [0], [0], [1], [0, 0, 1, 1], [], []>} : vector<16x32xf32>, vector<32x128xf32>, vector<16x128xf32> -> vector<16x128xf32>
    %c0_16 = arith.constant 0 : index
    %c0_17 = arith.constant 0 : index
    %33 = vector.load %arg7[%c0_16, %c0_17] : memref<16x1xf32, #tpu.memory_space<vmem>>, vector<16x1xf32>
    %34 = vector.broadcast %33 : vector<16x1xf32> to vector<16x128xf32>
    %35 = arith.addf %32, %34 : vector<16x128xf32>
    %cst_18 = arith.constant 0.000000e+00 : f32
    %36 = vector.broadcast %cst_18 : f32 to vector<16x128xf32>
    %37 = arith.cmpf oge, %35, %36 : vector<16x128xf32>
    %cst_19 = arith.constant 1.000000e-03 : f32
    %38 = vector.broadcast %cst_19 : f32 to vector<16x128xf32>
    %39 = arith.mulf %38, %35 : vector<16x128xf32>
    %40 = arith.select %37, %35, %39 : vector<16x128xi1>, vector<16x128xf32>
    %c0_20 = arith.constant 0 : index
    %c0_21 = arith.constant 0 : index
    %41 = vector.load %arg8[%c0_20, %c0_21] : memref<16x1xf32, #tpu.memory_space<vmem>>, vector<16x1xf32>
    %42 = vector.broadcast %41 : vector<16x1xf32> to vector<16x128xf32>
    %43 = arith.mulf %42, %40 : vector<16x128xf32>
    %cst_22 = arith.constant dense<0.000000e+00> : vector<128xf32>
    %44 = vector.multi_reduction <add>, %43, %cst_22 [0] : vector<16x128xf32> to vector<128xf32>
    %45 = vector.shape_cast %44 : vector<128xf32> to vector<1x128xf32>
    %c0_23 = arith.constant 0 : index
    %c0_24 = arith.constant 0 : index
    %46 = vector.load %arg9[%c0_23, %c0_24] : memref<1x1xf32, #tpu.memory_space<vmem>>, vector<1x1xf32>
    %47 = vector.broadcast %46 : vector<1x1xf32> to vector<1x128xf32>
    %48 = arith.addf %45, %47 : vector<1x128xf32>
    %cst_25 = arith.constant 0.000000e+00 : f32
    %49 = vector.broadcast %cst_25 : f32 to vector<1x128xf32>
    %50 = arith.subf %49, %48 : vector<1x128xf32>
    %51 = math.exp %50 : vector<1x128xf32>
    %cst_26 = arith.constant 1.000000e+00 : f32
    %52 = vector.broadcast %cst_26 : f32 to vector<1x128xf32>
    %53 = arith.addf %52, %51 : vector<1x128xf32>
    %54 = tpu.reciprocal %53 {approx = true} : vector<1x128xf32> -> vector<1x128xf32>
    %c0_27 = arith.constant 0 : index
    %c0_28 = arith.constant 0 : index
    %55 = vector.load %arg10[%c0_27, %c0_28] : memref<1x128xf32, #tpu.memory_space<vmem>>, vector<1x128xf32>
    tpu.vector_store %arg10[%c0_27, %c0_28], %54 {strides = array<i32>} : memref<1x128xf32, #tpu.memory_space<vmem>>, vector<1x128xf32>,
    return
  }
  func.func @transform_0(%arg0: i32) -> (i32, i32) {
    %c0_i32 = arith.constant 0 : i32
    %c0_i32_0 = arith.constant 0 : i32
    return %c0_i32, %arg0 : i32, i32
  }
  func.func @transform_1(%arg0: i32) -> (i32, i32) {
    %c0_i32 = arith.constant 0 : i32
    %c0_i32_0 = arith.constant 0 : i32
    %c0_i32_1 = arith.constant 0 : i32
    return %c0_i32, %c0_i32_0 : i32, i32
  }
  func.func @transform_2(%arg0: i32) -> (i32, i32) {
    %c0_i32 = arith.constant 0 : i32
    %c0_i32_0 = arith.constant 0 : i32
    %c0_i32_1 = arith.constant 0 : i32
    return %c0_i32, %c0_i32_0 : i32, i32
  }
  func.func @transform_3(%arg0: i32) -> (i32, i32) {
    %c0_i32 = arith.constant 0 : i32
    %c0_i32_0 = arith.constant 0 : i32
    %c0_i32_1 = arith.constant 0 : i32
    return %c0_i32, %c0_i32_0 : i32, i32
  }
  func.func @transform_4(%arg0: i32) -> (i32, i32) {
    %c0_i32 = arith.constant 0 : i32
    %c0_i32_0 = arith.constant 0 : i32
    %c0_i32_1 = arith.constant 0 : i32
    return %c0_i32, %c0_i32_0 : i32, i32
  }
  func.func @transform_5(%arg0: i32) -> (i32, i32) {
    %c0_i32 = arith.constant 0 : i32
    %c0_i32_0 = arith.constant 0 : i32
    %c0_i32_1 = arith.constant 0 : i32
    return %c0_i32, %c0_i32_0 : i32, i32
  }
  func.func @transform_6(%arg0: i32) -> (i32, i32) {
    %c0_i32 = arith.constant 0 : i32
    %c0_i32_0 = arith.constant 0 : i32
    %c0_i32_1 = arith.constant 0 : i32
    return %c0_i32, %c0_i32_0 : i32, i32
  }
  func.func @transform_7(%arg0: i32) -> (i32, i32) {
    %c0_i32 = arith.constant 0 : i32
    %c0_i32_0 = arith.constant 0 : i32
    %c0_i32_1 = arith.constant 0 : i32
    return %c0_i32, %c0_i32_0 : i32, i32
  }
  func.func @transform_8(%arg0: i32) -> (i32, i32) {
    %c0_i32 = arith.constant 0 : i32
    %c0_i32_0 = arith.constant 0 : i32
    %c0_i32_1 = arith.constant 0 : i32
    return %c0_i32, %c0_i32_0 : i32, i32
  }
  func.func @transform_9(%arg0: i32) -> (i32, i32) {
    %c0_i32 = arith.constant 0 : i32
    %c0_i32_0 = arith.constant 0 : i32
    return %c0_i32, %arg0 : i32, i32
  }
}

</mosaic_0001>

<llo_original>
// kernel: tpu_custom_call.1
$region0: #{tpu_custom_call.1}
  #allocation0 [shape = 'u32[]', space=smem, size = 0x4, offset = 0x4, fixed_abs, tag = 'smem constant byte address 0x4 - core index']
  #allocation1 [shape = 'u32[144,128]{1,0:T(1,128)}', space=vmem, size = 0x12000, scoped, tag = 'internal scratch']
  #allocation2 [shape = 'f32[1,1]{1,0:T(1,128)S(1)}', space=vmem, size = 0x200, scoped, tag = 'scoped memory for tpu_custom_call.1']
  %s0 = inlined_call_operand.vmem [shape: f32[2,384], index: 0, kind: input, shape index: {}]
  %s1 = inlined_call_operand.vmem [shape: f32[64,2], index: 1, kind: input, shape index: {}]
  %s2 = inlined_call_operand.vmem [shape: f32[64,1], index: 2, kind: input, shape index: {}]
  %s3 = inlined_call_operand.vmem [shape: f32[32,64], index: 3, kind: input, shape index: {}]
  %s4 = inlined_call_operand.vmem [shape: f32[32,1], index: 4, kind: input, shape index: {}]
  %s5 = inlined_call_operand.vmem [shape: f32[16,32], index: 5, kind: input, shape index: {}]
  %s6 = inlined_call_operand.vmem [shape: f32[16,1], index: 6, kind: input, shape index: {}]
  %s7 = inlined_call_operand.vmem [shape: f32[16,1], index: 7, kind: input, shape index: {}]
  %s8 = inlined_call_operand.<no memory space> [shape: f32[1,1], index: 8, kind: input, shape index: {}]
  %s9 = inlined_call_operand.hbm [shape: f32[1,384], index: 9, kind: output, shape index: {}]
  %s10 = sld [smem:[#allocation0]]
  $region69: #{tpu_custom_call.1} parent=0
    _
  %s12 = ssub.s32 1, %s10
  %s13 = scalar_select 0, %s12, %s10
  %v14 = vstv %s8
  %15 = vst [vmem:[#allocation2] sm:$0x1] %v14
  $region1: #{tpu_custom_call.1} parent=0
    #allocation3 [shape = 'u8[1024]{0}', space=vmem, size = 0x400, scoped, tag = 'output window, operand 0']
    #allocation4 [shape = 's32[2]{0}', space=sflag, size = 0x8, scoped, tag = 'scoped memory for tpu_custom_call.1']
    %16 = vsyncpa [#allocation4], 0
    %s17 = scalar_lea.sflag [#allocation4], 1
    %18 = vsyncpa %s17, 0
    loop: start=0, step=1, limit=5
    $region2: #{tpu_custom_call.1} parent=1 // loop_pre_header
      _
    $region3: #{tpu_custom_call.1} parent=1 // loop_header
      %s20 = sphi 0, %s24
      %p21 = scmp.ge.s32.totalorder %s20, 5
      %s30 = sphi 0, %s32
      %s33 = sphi 0, %s30
      %s34 = sphi 0, %s33
      %s50 = sphi 0, %s34
      %s54 = sphi 0, %s54
      %s56 = sphi 0, %s54
      %s57 = sphi 0, %s56
      %s71 = sphi 0, %s57
      %s75 = sphi 0, %s75
      %s77 = sphi 0, %s75
      %s78 = sphi 0, %s77
      %s92 = sphi 0, %s78
      %s96 = sphi 0, %s96
      %s98 = sphi 0, %s96
      %s99 = sphi 0, %s98
      %s113 = sphi 0, %s99
      %s117 = sphi 0, %s117
      %s119 = sphi 0, %s117
      %s120 = sphi 0, %s119
      %s134 = sphi 0, %s120
      %s138 = sphi 0, %s138
      %s140 = sphi 0, %s138
      %s141 = sphi 0, %s140
      %s155 = sphi 0, %s141
      %s159 = sphi 0, %s159
      %s161 = sphi 0, %s159
      %s162 = sphi 0, %s161
      %s176 = sphi 0, %s162
      %s180 = sphi 0, %s180
      %s182 = sphi 0, %s180
      %s183 = sphi 0, %s182
      %s197 = sphi 0, %s183
      %s201 = sphi 0, %s201
      %s203 = sphi 0, %s201
      %s204 = sphi 0, %s203
      %s218 = sphi 0, %s204
      %s224 = sphi 0, %s226
      %s227 = sphi 0, %s224
      %s228 = sphi 0, %s227
      %s244 = sphi 0, %s228
    $region4: #{tpu_custom_call.1} parent=1 // loop_header_branch
      %23 = sbr.rel (%p21) target = $region8
    $region5: #{tpu_custom_call.1} parent=1 // loop_body
      %s25 = ssub.s32 %s20, 1
      %s26 = ssub.s32 %s20, 2
      %s27 = sadd.s32 %s20, 1
      %s28 = ssub.s32 %s20, %s27
      %p29 = scmp.eq.s32.totalorder %s28, 0
      %s31 = sadd.s32 %s30, 1
      %s32 = scalar_select %p29, %s30, %s31
      %p35 = pneg %p29
      %p36 = scmp.eq.s32.totalorder %s20, 2
      %p37 = por %p35, %p36
      %p38 = scmp.ne.s32.totalorder %s30, %s33
      %p39 = scmp.eq.s32.totalorder %s20, 0
      %p40 = por %p38, %p39
      %p41 = scmp.ne.s32.totalorder %s30, %s33
      %p42 = scmp.eq.s32.totalorder %s25, 2
      %p43 = por %p41, %p42
      %p44 = scmp.ne.s32.totalorder %s33, %s34
      %p45 = scmp.eq.s32.totalorder %s25, 0
      %p46 = por %p44, %p45
      %p47 = scmp.ne.s32.totalorder %s33, %s34
      %p48 = scmp.eq.s32.totalorder %s26, 2
      %p49 = por %p47, %p48
      %p51 = scmp.ne.s32.totalorder %s34, %s50
      %p52 = scmp.eq.s32.totalorder %s26, 0
      %p53 = por %p51, %p52
      %s55 = sadd.s32 %s54, 1
      %p58 = scmp.eq.s32.totalorder %s20, 2
      %p59 = scmp.ne.s32.totalorder %s54, %s56
      %p60 = scmp.eq.s32.totalorder %s20, 0
      %p61 = por %p59, %p60
      %p62 = scmp.ne.s32.totalorder %s54, %s56
      %p63 = scmp.eq.s32.totalorder %s25, 2
      %p64 = por %p62, %p63
      %p65 = scmp.ne.s32.totalorder %s56, %s57
      %p66 = scmp.eq.s32.totalorder %s25, 0
      %p67 = por %p65, %p66
      %p68 = scmp.ne.s32.totalorder %s56, %s57
      %p69 = scmp.eq.s32.totalorder %s26, 2
      %p70 = por %p68, %p69
      %p72 = scmp.ne.s32.totalorder %s57, %s71
      %p73 = scmp.eq.s32.totalorder %s26, 0
      %p74 = por %p72, %p73
      %s76 = sadd.s32 %s75, 1
      %p79 = scmp.eq.s32.totalorder %s20, 2
      %p80 = scmp.ne.s32.totalorder %s75, %s77
      %p81 = scmp.eq.s32.totalorder %s20, 0
      %p82 = por %p80, %p81
      %p83 = scmp.ne.s32.totalorder %s75, %s77
      %p84 = scmp.eq.s32.totalorder %s25, 2
      %p85 = por %p83, %p84
      %p86 = scmp.ne.s32.totalorder %s77, %s78
      %p87 = scmp.eq.s32.totalorder %s25, 0
      %p88 = por %p86, %p87
      %p89 = scmp.ne.s32.totalorder %s77, %s78
      %p90 = scmp.eq.s32.totalorder %s26, 2
      %p91 = por %p89, %p90
      %p93 = scmp.ne.s32.totalorder %s78, %s92
      %p94 = scmp.eq.s32.totalorder %s26, 0
      %p95 = por %p93, %p94
      %s97 = sadd.s32 %s96, 1
      %p100 = scmp.eq.s32.totalorder %s20, 2
      %p101 = scmp.ne.s32.totalorder %s96, %s98
      %p102 = scmp.eq.s32.totalorder %s20, 0
      %p103 = por %p101, %p102
      %p104 = scmp.ne.s32.totalorder %s96, %s98
      %p105 = scmp.eq.s32.totalorder %s25, 2
      %p106 = por %p104, %p105
      %p107 = scmp.ne.s32.totalorder %s98, %s99
      %p108 = scmp.eq.s32.totalorder %s25, 0
      %p109 = por %p107, %p108
      %p110 = scmp.ne.s32.totalorder %s98, %s99
      %p111 = scmp.eq.s32.totalorder %s26, 2
      %p112 = por %p110, %p111
      %p114 = scmp.ne.s32.totalorder %s99, %s113
      %p115 = scmp.eq.s32.totalorder %s26, 0
      %p116 = por %p114, %p115
      %s118 = sadd.s32 %s117, 1
      %p121 = scmp.eq.s32.totalorder %s20, 2
      %p122 = scmp.ne.s32.totalorder %s117, %s119
      %p123 = scmp.eq.s32.totalorder %s20, 0
      %p124 = por %p122, %p123
      %p125 = scmp.ne.s32.totalorder %s117, %s119
      %p126 = scmp.eq.s32.totalorder %s25, 2
      %p127 = por %p125, %p126
      %p128 = scmp.ne.s32.totalorder %s119, %s120
      %p129 = scmp.eq.s32.totalorder %s25, 0
      %p130 = por %p128, %p129
      %p131 = scmp.ne.s32.totalorder %s119, %s120
      %p132 = scmp.eq.s32.totalorder %s26, 2
      %p133 = por %p131, %p132
      %p135 = scmp.ne.s32.totalorder %s120, %s134
      %p136 = scmp.eq.s32.totalorder %s26, 0
      %p137 = por %p135, %p136
      %s139 = sadd.s32 %s138, 1
      %p142 = scmp.eq.s32.totalorder %s20, 2
      %p143 = scmp.ne.s32.totalorder %s138, %s140
      %p144 = scmp.eq.s32.totalorder %s20, 0
      %p145 = por %p143, %p144
      %p146 = scmp.ne.s32.totalorder %s138, %s140
      %p147 = scmp.eq.s32.totalorder %s25, 2
      %p148 = por %p146, %p147
      %p149 = scmp.ne.s32.totalorder %s140, %s141
      %p150 = scmp.eq.s32.totalorder %s25, 0
      %p151 = por %p149, %p150
      %p152 = scmp.ne.s32.totalorder %s140, %s141
      %p153 = scmp.eq.s32.totalorder %s26, 2
      %p154 = por %p152, %p153
      %p156 = scmp.ne.s32.totalorder %s141, %s155
      %p157 = scmp.eq.s32.totalorder %s26, 0
      %p158 = por %p156, %p157
      %s160 = sadd.s32 %s159, 1
      %p163 = scmp.eq.s32.totalorder %s20, 2
      %p164 = scmp.ne.s32.totalorder %s159, %s161
      %p165 = scmp.eq.s32.totalorder %s20, 0
      %p166 = por %p164, %p165
      %p167 = scmp.ne.s32.totalorder %s159, %s161
      %p168 = scmp.eq.s32.totalorder %s25, 2
      %p169 = por %p167, %p168
      %p170 = scmp.ne.s32.totalorder %s161, %s162
      %p171 = scmp.eq.s32.totalorder %s25, 0
      %p172 = por %p170, %p171
      %p173 = scmp.ne.s32.totalorder %s161, %s162
      %p174 = scmp.eq.s32.totalorder %s26, 2
      %p175 = por %p173, %p174
      %p177 = scmp.ne.s32.totalorder %s162, %s176
      %p178 = scmp.eq.s32.totalorder %s26, 0
      %p179 = por %p177, %p178
      %s181 = sadd.s32 %s180, 1
      %p184 = scmp.eq.s32.totalorder %s20, 2
      %p185 = scmp.ne.s32.totalorder %s180, %s182
      %p186 = scmp.eq.s32.totalorder %s20, 0
      %p187 = por %p185, %p186
      %p188 = scmp.ne.s32.totalorder %s180, %s182
      %p189 = scmp.eq.s32.totalorder %s25, 2
      %p190 = por %p188, %p189
      %p191 = scmp.ne.s32.totalorder %s182, %s183
      %p192 = scmp.eq.s32.totalorder %s25, 0
      %p193 = por %p191, %p192
      %p194 = scmp.ne.s32.totalorder %s182, %s183
      %p195 = scmp.eq.s32.totalorder %s26, 2
      %p196 = por %p194, %p195
      %p198 = scmp.ne.s32.totalorder %s183, %s197
      %p199 = scmp.eq.s32.totalorder %s26, 0
      %p200 = por %p198, %p199
      %s202 = sadd.s32 %s201, 1
      %p205 = scmp.eq.s32.totalorder %s20, 2
      %p206 = scmp.ne.s32.totalorder %s201, %s203
      %p207 = scmp.eq.s32.totalorder %s20, 0
      %p208 = por %p206, %p207
      %p209 = scmp.ne.s32.totalorder %s201, %s203
      %p210 = scmp.eq.s32.totalorder %s25, 2
      %p211 = por %p209, %p210
      %p212 = scmp.ne.s32.totalorder %s203, %s204
      %p213 = scmp.eq.s32.totalorder %s25, 0
      %p214 = por %p212, %p213
      %p215 = scmp.ne.s32.totalorder %s203, %s204
      %p216 = scmp.eq.s32.totalorder %s26, 2
      %p217 = por %p215, %p216
      %p219 = scmp.ne.s32.totalorder %s204, %s218
      %p220 = scmp.eq.s32.totalorder %s26, 0
      %p221 = por %p219, %p220
      %s222 = ssub.s32 %s20, %s27
      %p223 = scmp.eq.s32.totalorder %s222, 0
      %s225 = sadd.s32 %s224, 1
      %s226 = scalar_select %p223, %s224, %s225
      %p229 = pneg %p223
      %p230 = scmp.eq.s32.totalorder %s20, 2
      %p231 = por %p229, %p230
      %p232 = scmp.ne.s32.totalorder %s224, %s227
      %p233 = scmp.eq.s32.totalorder %s20, 0
      %p234 = por %p232, %p233
      %p235 = scmp.ne.s32.totalorder %s224, %s227
      %p236 = scmp.eq.s32.totalorder %s25, 2
      %p237 = por %p235, %p236
      %p238 = scmp.ne.s32.totalorder %s227, %s228
      %p239 = scmp.eq.s32.totalorder %s25, 0
      %p240 = por %p238, %p239
      %p241 = scmp.ne.s32.totalorder %s227, %s228
      %p242 = scmp.eq.s32.totalorder %s26, 2
      %p243 = por %p241, %p242
      %p245 = scmp.ne.s32.totalorder %s228, %s244
      %p246 = scmp.eq.s32.totalorder %s26, 0
      %p247 = por %p245, %p246
      %p248 = scmp.le.s32.totalorder 1, %s20
      %p249 = scmp.lt.s32.totalorder %s20, 4
      %p250 = pnand %p248, %p249
      %p251 = pneg %p250
      // Predicated region
      $region9: #{tpu_custom_call.1} parent=5 // pred_check
        _
      $region10: #{tpu_custom_call.1} parent=5 // pred_check_branch
        %253 = sbr.rel (%p250) target = $region12
      $region11: #{tpu_custom_call.1} parent=5 // pred_region
        %s254 = ssub.s32 %s20, 1
        // Predicated region
        $region13: #{tpu_custom_call.1} parent=11 // pred_check
          %p255 = pneg %p67
        $region14: #{tpu_custom_call.1} parent=11 // pred_check_branch
          %257 = sbr.rel (%p255) target = $region16
        $region15: #{tpu_custom_call.1} parent=11 // pred_region
          _
        $region16: #{tpu_custom_call.1} parent=11 // pred_fallthru
          _
        // Predicated region
        $region17: #{tpu_custom_call.1} parent=11 // pred_check
          %p258 = pneg %p88
        $region18: #{tpu_custom_call.1} parent=11 // pred_check_branch
          %260 = sbr.rel (%p258) target = $region20
        $region19: #{tpu_custom_call.1} parent=11 // pred_region
          _
        $region20: #{tpu_custom_call.1} parent=11 // pred_fallthru
          _
        // Predicated region
        $region21: #{tpu_custom_call.1} parent=11 // pred_check
          %p261 = pneg %p109
        $region22: #{tpu_custom_call.1} parent=11 // pred_check_branch
          %263 = sbr.rel (%p261) target = $region24
        $region23: #{tpu_custom_call.1} parent=11 // pred_region
          _
        $region24: #{tpu_custom_call.1} parent=11 // pred_fallthru
          _
        // Predicated region
        $region25: #{tpu_custom_call.1} parent=11 // pred_check
          %p264 = pneg %p130
        $region26: #{tpu_custom_call.1} parent=11 // pred_check_branch
          %266 = sbr.rel (%p264) target = $region28
        $region27: #{tpu_custom_call.1} parent=11 // pred_region
          _
        $region28: #{tpu_custom_call.1} parent=11 // pred_fallthru
          _
        // Predicated region
        $region29: #{tpu_custom_call.1} parent=11 // pred_check
          %p267 = pneg %p151
        $region30: #{tpu_custom_call.1} parent=11 // pred_check_branch
          %269 = sbr.rel (%p267) target = $region32
        $region31: #{tpu_custom_call.1} parent=11 // pred_region
          _
        $region32: #{tpu_custom_call.1} parent=11 // pred_fallthru
          _
        // Predicated region
        $region33: #{tpu_custom_call.1} parent=11 // pred_check
          %p270 = pneg %p172
        $region34: #{tpu_custom_call.1} parent=11 // pred_check_branch
          %272 = sbr.rel (%p270) target = $region36
        $region35: #{tpu_custom_call.1} parent=11 // pred_region
          _
        $region36: #{tpu_custom_call.1} parent=11 // pred_fallthru
          _
        // Predicated region
        $region37: #{tpu_custom_call.1} parent=11 // pred_check
          %p273 = pneg %p193
        $region38: #{tpu_custom_call.1} parent=11 // pred_check_branch
          %275 = sbr.rel (%p273) target = $region40
        $region39: #{tpu_custom_call.1} parent=11 // pred_region
          _
        $region40: #{tpu_custom_call.1} parent=11 // pred_fallthru
          _
        // Predicated region
        $region41: #{tpu_custom_call.1} parent=11 // pred_check
          %p276 = pneg %p214
        $region42: #{tpu_custom_call.1} parent=11 // pred_check_branch
          %278 = sbr.rel (%p276) target = $region44
        $region43: #{tpu_custom_call.1} parent=11 // pred_region
          _
        $region44: #{tpu_custom_call.1} parent=11 // pred_fallthru
          _
      $region12: #{tpu_custom_call.1} parent=5 // pred_fallthru
        _
      %p279 = scmp.lt.s32.totalorder %s20, 3
      // Predicated region
      $region45: #{tpu_custom_call.1} parent=5 // pred_check
        %p280 = pneg %p279
      $region46: #{tpu_custom_call.1} parent=5 // pred_check_branch
        %282 = sbr.rel (%p280) target = $region48
      $region47: #{tpu_custom_call.1} parent=5 // pred_region
        // Predicated region
        $region49: #{tpu_custom_call.1} parent=47 // pred_check
          %p283 = pneg %p40
        $region50: #{tpu_custom_call.1} parent=47 // pred_check_branch
          %285 = sbr.rel (%p283) target = $region52
        $region51: #{tpu_custom_call.1} parent=47 // pred_region
          %p286 = scmp.lt.s32.totalorder %s20, 2
          %s287 = scalar_select %p286, %s20, 2
          %s288 = smul.addr %s287, 2
          %s289 = scalar_lea.vmem %s0, %s288
        $region52: #{tpu_custom_call.1} parent=47 // pred_fallthru
          _
      $region48: #{tpu_custom_call.1} parent=5 // pred_fallthru
        _
      %p290 = scmp.le.s32.totalorder 1, %s20
      %p291 = scmp.lt.s32.totalorder %s20, 4
      %p292 = pnand %p290, %p291
      %p293 = pneg %p292
      // Predicated region
      $region53: #{tpu_custom_call.1} parent=5 // pred_check
        _
      $region54: #{tpu_custom_call.1} parent=5 // pred_check_branch
        %295 = sbr.rel (%p292) target = $region56
      $region55: #{tpu_custom_call.1} parent=5 // pred_region
        %s296 = ssub.s32 %s20, 1
        %p297 = scmp.lt.s32.totalorder %s25, 2
        %s298 = scalar_select %p297, %s25, 2
        %s299 = smul.addr %s298, 2
        %s300 = scalar_lea.vmem %s0, %s299
        %p301 = pneg %p46
        %p302 = pneg %p43
        %p303 = pneg %p67
        %p304 = pneg %p64
        %p305 = pneg %p88
        %p306 = pneg %p85
        %p307 = pneg %p109
        %p308 = pneg %p106
        %p309 = pneg %p130
        %p310 = pneg %p127
        %p311 = pneg %p151
        %p312 = pneg %p148
        %p313 = pneg %p172
        %p314 = pneg %p169
        %p315 = pneg %p193
        %p316 = pneg %p190
        %p317 = pneg %p214
        %p318 = pneg %p211
        %p319 = pneg %p240
        %p320 = pneg %p237
        %s321 = sand.u32 %s227, 1
        %s322 = scalar_lea.sflag [#allocation4], %s321
        %s323 = sand.u32 %s227, 1
        %s324 = scalar_lea.vmem [#allocation3], %s323
        %p325 = scmp.lt.s32.totalorder %s25, 2
        %s326 = scalar_select %p325, %s25, 2
        %s327 = smul.addr %s326, 2
        %s328 = scalar_lea.vmem %s0, %s327
        %v329 = vld [vmem:[%s328] sm:$0x3]
        %v330 = vld [vmem:[%s1] sm:$0xff]
        %v331 = vld [vmem:[%s1 + $0x8] sm:$0xff]
        %v332 = vld [vmem:[%s1 + $0x10] sm:$0xff]
        %v333 = vld [vmem:[%s1 + $0x18] sm:$0xff]
        %v334 = vld [vmem:[%s1 + $0x20] sm:$0xff]
        %v335 = vld [vmem:[%s1 + $0x28] sm:$0xff]
        %v336 = vld [vmem:[%s1 + $0x30] sm:$0xff]
        %v337 = vld [vmem:[%s1 + $0x38] sm:$0xff]
        %339 = vset.pattern.permute.xlu0 0
        %340 = vperm.xlu0 %339, %v330
        %v341 = vpop.permute.xlu0 %340
        %344 = vset.pattern.permute.xlu0 0
        %345 = vperm.xlu0 %344, %v331
        %v346 = vpop.permute.xlu0 %345
        %349 = vset.pattern.permute.xlu0 0
        %350 = vperm.xlu0 %349, %v332
        %v351 = vpop.permute.xlu0 %350
        %354 = vset.pattern.permute.xlu0 0
        %355 = vperm.xlu0 %354, %v333
        %v356 = vpop.permute.xlu0 %355
        %359 = vset.pattern.permute.xlu0 0
        %360 = vperm.xlu0 %359, %v334
        %v361 = vpop.permute.xlu0 %360
        %364 = vset.pattern.permute.xlu0 0
        %365 = vperm.xlu0 %364, %v335
        %v366 = vpop.permute.xlu0 %365
        %369 = vset.pattern.permute.xlu0 0
        %370 = vperm.xlu0 %369, %v336
        %v371 = vpop.permute.xlu0 %370
        %374 = vset.pattern.permute.xlu0 0
        %375 = vperm.xlu0 %374, %v337
        %v376 = vpop.permute.xlu0 %375
        %v378 = vlaneseq
        %v379 = vshrl.u32 %v378, 7
        %v380 = vsub.s32 0, %v379
        %v381 = vrot.slane %v329, %v380
        %v382 = vmul.f32 %v341, %v381
        %v383 = vmul.f32 %v346, %v381
        %v384 = vmul.f32 %v351, %v381
        %v385 = vmul.f32 %v356, %v381
        %v386 = vmul.f32 %v361, %v381
        %v387 = vmul.f32 %v366, %v381
        %v388 = vmul.f32 %v371, %v381
        %v389 = vmul.f32 %v376, %v381
        %390 = vset.pattern.permute.xlu0 1
        %391 = vperm.xlu0 %390, %v330
        %v392 = vpop.permute.xlu0 %391
        %394 = vset.pattern.permute.xlu0 1
        %395 = vperm.xlu0 %394, %v331
        %v396 = vpop.permute.xlu0 %395
        %398 = vset.pattern.permute.xlu0 1
        %399 = vperm.xlu0 %398, %v332
        %v400 = vpop.permute.xlu0 %399
        %402 = vset.pattern.permute.xlu0 1
        %403 = vperm.xlu0 %402, %v333
        %v404 = vpop.permute.xlu0 %403
        %406 = vset.pattern.permute.xlu0 1
        %407 = vperm.xlu0 %406, %v334
        %v408 = vpop.permute.xlu0 %407
        %410 = vset.pattern.permute.xlu0 1
        %411 = vperm.xlu0 %410, %v335
        %v412 = vpop.permute.xlu0 %411
        %414 = vset.pattern.permute.xlu0 1
        %415 = vperm.xlu0 %414, %v336
        %v416 = vpop.permute.xlu0 %415
        %418 = vset.pattern.permute.xlu0 1
        %419 = vperm.xlu0 %418, %v337
        %v420 = vpop.permute.xlu0 %419
        %v422 = vlaneseq
        %v423 = vshrl.u32 %v422, 7
        %v424 = vsub.s32 1, %v423
        %v425 = vrot.slane %v329, %v424
        %v426 = vmul.f32 %v392, %v425
        %v427 = vmul.f32 %v396, %v425
        %v428 = vmul.f32 %v400, %v425
        %v429 = vmul.f32 %v404, %v425
        %v430 = vmul.f32 %v408, %v425
        %v431 = vmul.f32 %v412, %v425
        %v432 = vmul.f32 %v416, %v425
        %v433 = vmul.f32 %v420, %v425
        %v434 = vadd.f32 %v382, %v426
        %v435 = vadd.f32 %v383, %v427
        %v436 = vadd.f32 %v384, %v428
        %v437 = vadd.f32 %v385, %v429
        %v438 = vadd.f32 %v386, %v430
        %v439 = vadd.f32 %v387, %v431
        %v440 = vadd.f32 %v388, %v432
        %v441 = vadd.f32 %v389, %v433
        %v442 = vld [vmem:[%s2] sm:$0xff]
        %v443 = vld [vmem:[%s2 + $0x8] sm:$0xff]
        %v444 = vld [vmem:[%s2 + $0x10] sm:$0xff]
        %v445 = vld [vmem:[%s2 + $0x18] sm:$0xff]
        %v446 = vld [vmem:[%s2 + $0x20] sm:$0xff]
        %v447 = vld [vmem:[%s2 + $0x28] sm:$0xff]
        %v448 = vld [vmem:[%s2 + $0x30] sm:$0xff]
        %v449 = vld [vmem:[%s2 + $0x38] sm:$0xff]
        %451 = vset.pattern.permute.xlu0 0
        %452 = vperm.xlu0 %451, %v442
        %v453 = vpop.permute.xlu0 %452
        %456 = vset.pattern.permute.xlu0 0
        %457 = vperm.xlu0 %456, %v443
        %v458 = vpop.permute.xlu0 %457
        %461 = vset.pattern.permute.xlu0 0
        %462 = vperm.xlu0 %461, %v444
        %v463 = vpop.permute.xlu0 %462
        %466 = vset.pattern.permute.xlu0 0
        %467 = vperm.xlu0 %466, %v445
        %v468 = vpop.permute.xlu0 %467
        %471 = vset.pattern.permute.xlu0 0
        %472 = vperm.xlu0 %471, %v446
        %v473 = vpop.permute.xlu0 %472
        %476 = vset.pattern.permute.xlu0 0
        %477 = vperm.xlu0 %476, %v447
        %v478 = vpop.permute.xlu0 %477
        %481 = vset.pattern.permute.xlu0 0
        %482 = vperm.xlu0 %481, %v448
        %v483 = vpop.permute.xlu0 %482
        %486 = vset.pattern.permute.xlu0 0
        %487 = vperm.xlu0 %486, %v449
        %v488 = vpop.permute.xlu0 %487
        %v490 = vadd.f32 %v434, %v453
        %v491 = vadd.f32 %v435, %v458
        %v492 = vadd.f32 %v436, %v463
        %v493 = vadd.f32 %v437, %v468
        %v494 = vadd.f32 %v438, %v473
        %v495 = vadd.f32 %v439, %v478
        %v496 = vadd.f32 %v440, %v483
        %v497 = vadd.f32 %v441, %v488
        %vm498 = vcmp.ge.f32.partialorder %v490, 0.0
        %vm499 = vcmp.ge.f32.partialorder %v491, 0.0
        %vm500 = vcmp.ge.f32.partialorder %v492, 0.0
        %vm501 = vcmp.ge.f32.partialorder %v493, 0.0
        %vm502 = vcmp.ge.f32.partialorder %v494, 0.0
        %vm503 = vcmp.ge.f32.partialorder %v495, 0.0
        %vm504 = vcmp.ge.f32.partialorder %v496, 0.0
        %vm505 = vcmp.ge.f32.partialorder %v497, 0.0
        %v506 = vmul.f32 %v490, 0.001
        %v507 = vmul.f32 %v491, 0.001
        %v508 = vmul.f32 %v492, 0.001
        %v509 = vmul.f32 %v493, 0.001
        %v510 = vmul.f32 %v494, 0.001
        %v511 = vmul.f32 %v495, 0.001
        %v512 = vmul.f32 %v496, 0.001
        %v513 = vmul.f32 %v497, 0.001
        %v514 = vsel %vm498, %v490, %v506
        %v515 = vsel %vm499, %v491, %v507
        %v516 = vsel %vm500, %v492, %v508
        %v517 = vsel %vm501, %v493, %v509
        %v518 = vsel %vm502, %v494, %v510
        %v519 = vsel %vm503, %v495, %v511
        %v520 = vsel %vm504, %v496, %v512
        %v521 = vsel %vm505, %v497, %v513
        %v522 = vld [vmem:[%s3] sm:$0xff]
        %v523 = vld [vmem:[%s3 + $0x8] sm:$0xff]
        %v524 = vld [vmem:[%s3 + $0x10] sm:$0xff]
        %v525 = vld [vmem:[%s3 + $0x18] sm:$0xff]
        %v526 = vld [vmem:[%s4] sm:$0xff]
        %v527 = vld [vmem:[%s4 + $0x8] sm:$0xff]
        %v528 = vld [vmem:[%s4 + $0x10] sm:$0xff]
        %v529 = vld [vmem:[%s4 + $0x18] sm:$0xff]
        %531 = vset.pattern.permute.xlu0 0
        %532 = vperm.xlu0 %531, %v526
        %v533 = vpop.permute.xlu0 %532
        %536 = vset.pattern.permute.xlu0 0
        %537 = vperm.xlu0 %536, %v527
        %v538 = vpop.permute.xlu0 %537
        %541 = vset.pattern.permute.xlu0 0
        %542 = vperm.xlu0 %541, %v528
        %v543 = vpop.permute.xlu0 %542
        %546 = vset.pattern.permute.xlu0 0
        %547 = vperm.xlu0 %546, %v529
        %v548 = vpop.permute.xlu0 %547
        %vm550 = vcmask 523264
        %v552 = vsel %vm550, %v522, 0
        %v555 = vsel %vm550, %v523, 0
        %v558 = vsel %vm550, %v524, 0
        %v561 = vsel %vm550, %v525, 0
        %563 = vmatprep.subr.mxu0 0.0
        %564 = vmatpush1.msra.mxu0 %v514
        %565 = vmatprep.subr.mxu0 0.0
        %566 = vmatpush1.msra.mxu0 %v515
        %567 = vmatprep.subr.mxu0 0.0
        %568 = vmatpush1.msra.mxu0 %v516
        %569 = vmatprep.subr.mxu0 0.0
        %570 = vmatpush1.msra.mxu0 %v517
        %571 = vmatprep.subr.mxu0 0.0
        %572 = vmatpush1.msra.mxu0 %v518
        %573 = vmatprep.subr.mxu0 0.0
        %574 = vmatpush1.msra.mxu0 %v519
        %575 = vmatprep.subr.mxu0 0.0
        %576 = vmatpush1.msra.mxu0 %v520
        %577 = vmatprep.subr.mxu0 0.0
        %578 = vmatpush1.msra.mxu0 %v521
        %579 = vmatprep.subr.mxu0 0.0
        %580 = vmatpush1.msra.mxu0 0.0
        %581 = vmatprep.subr.mxu0 0.0
        %582 = vmatpush1.msra.mxu0 0.0
        %583 = vmatprep.subr.mxu0 0.0
        %584 = vmatpush1.msra.mxu0 0.0
        %585 = vmatprep.subr.mxu0 0.0
        %586 = vmatpush1.msra.mxu0 0.0
        %587 = vmatprep.subr.mxu0 0.0
        %588 = vmatpush1.msra.mxu0 0.0
        %589 = vmatprep.subr.mxu0 0.0
        %590 = vmatpush1.msra.mxu0 0.0
        %591 = vmatprep.subr.mxu0 0.0
        %592 = vmatpush1.msra.mxu0 0.0
        %593 = vmatprep.subr.mxu0 0.0
        %594 = vmatpush1.msra.mxu0 0.0
        %595 = vmatprep.subr.mxu0 0.0
        %596 = vmatpush1.msra.mxu0 0.0
        %597 = vmatprep.subr.mxu0 0.0
        %598 = vmatpush1.msra.mxu0 0.0
        %599 = vmatprep.subr.mxu0 0.0
        %600 = vmatpush1.msra.mxu0 0.0
        %601 = vmatprep.subr.mxu0 0.0
        %602 = vmatpush1.msra.mxu0 0.0
        %603 = vmatprep.subr.mxu0 0.0
        %604 = vmatpush1.msra.mxu0 0.0
        %605 = vmatprep.subr.mxu0 0.0
        %606 = vmatpush1.msra.mxu0 0.0
        %607 = vmatprep.subr.mxu0 0.0
        %608 = vmatpush1.msra.mxu0 0.0
        %609 = vmatprep.subr.mxu0 0.0
        %610 = vmatpush1.msra.mxu0 0.0
        %611 = vmatprep.subr.mxu0 0.0
        %612 = vmatpush1.msra.mxu0 0.0
        %613 = vmatprep.subr.mxu0 0.0
        %614 = vmatpush1.msra.mxu0 0.0
        %615 = vmatprep.subr.mxu0 0.0
        %616 = vmatpush1.msra.mxu0 0.0
        %617 = vmatprep.subr.mxu0 0.0
        %618 = vmatpush1.msra.mxu0 0.0
        %619 = vmatprep.subr.mxu0 0.0
        %620 = vmatpush1.msra.mxu0 0.0
        %621 = vmatprep.subr.mxu0 0.0
        %622 = vmatpush1.msra.mxu0 0.0
        %623 = vmatprep.subr.mxu0 0.0
        %624 = vmatpush1.msra.mxu0 0.0
        %625 = vmatprep.subr.mxu0 0.0
        %626 = vmatpush1.msra.mxu0 0.0
        %627 = vmatprep.mubr.f32.mxu0 0.0
        %628 = vmatmul.mubr.f32.gmra.mrb[0].mxu0 %v552
        %v629 = vpop.f32.mrb[0].mxu0
        %v630 = vadd.f32 %v533, %v629
        %v631 = vpop.f32.mrb[0].mxu0
        %632 = vmatprep.mubr.f32.mxu0 0.0
        %633 = vmatmul.mubr.f32.gmra.mrb[0].mxu0 %v555
        %v634 = vpop.f32.mrb[0].mxu0
        %v635 = vadd.f32 %v538, %v634
        %v636 = vpop.f32.mrb[0].mxu0
        %637 = vmatprep.mubr.f32.mxu0 0.0
        %638 = vmatmul.mubr.f32.gmra.mrb[0].mxu0 %v558
        %v639 = vpop.f32.mrb[0].mxu0
        %v640 = vadd.f32 %v543, %v639
        %v641 = vpop.f32.mrb[0].mxu0
        %642 = vmatprep.mubr.f32.mxu0 0.0
        %643 = vmatmul.mubr.f32.gmra.mrb[0].mxu0 %v561
        %v644 = vpop.f32.mrb[0].mxu0
        %v645 = vadd.f32 %v548, %v644
        %v646 = vpop.f32.mrb[0].mxu0
        %647 = vdwg.mxu0
        %vm648 = vcmp.ge.f32.partialorder %v630, 0.0
        %vm649 = vcmp.ge.f32.partialorder %v635, 0.0
        %vm650 = vcmp.ge.f32.partialorder %v640, 0.0
        %vm651 = vcmp.ge.f32.partialorder %v645, 0.0
        %v652 = vmul.f32 %v630, 0.001
        %v653 = vmul.f32 %v635, 0.001
        %v654 = vmul.f32 %v640, 0.001
        %v655 = vmul.f32 %v645, 0.001
        %v656 = vsel %vm648, %v630, %v652
        %v657 = vsel %vm649, %v635, %v653
        %v658 = vsel %vm650, %v640, %v654
        %v659 = vsel %vm651, %v645, %v655
        %v660 = vld [vmem:[%s5] sm:$0xff]
        %v661 = vld [vmem:[%s5 + $0x8] sm:$0xff]
        %v662 = vld [vmem:[%s6] sm:$0xff]
        %v663 = vld [vmem:[%s6 + $0x8] sm:$0xff]
        %665 = vset.pattern.permute.xlu0 0
        %666 = vperm.xlu0 %665, %v662
        %v667 = vpop.permute.xlu0 %666
        %670 = vset.pattern.permute.xlu0 0
        %671 = vperm.xlu0 %670, %v663
        %v672 = vpop.permute.xlu0 %671
        %vm674 = vcmask 261120
        %v676 = vsel %vm674, %v660, 0
        %v679 = vsel %vm674, %v661, 0
        %681 = vmatprep.subr.mxu0 0.0
        %682 = vmatpush1.msra.mxu0 %v656
        %683 = vmatprep.subr.mxu0 0.0
        %684 = vmatpush1.msra.mxu0 %v657
        %685 = vmatprep.subr.mxu0 0.0
        %686 = vmatpush1.msra.mxu0 %v658
        %687 = vmatprep.subr.mxu0 0.0
        %688 = vmatpush1.msra.mxu0 %v659
        %689 = vmatprep.subr.mxu0 0.0
        %690 = vmatpush1.msra.mxu0 0.0
        %691 = vmatprep.subr.mxu0 0.0
        %692 = vmatpush1.msra.mxu0 0.0
        %693 = vmatprep.subr.mxu0 0.0
        %694 = vmatpush1.msra.mxu0 0.0
        %695 = vmatprep.subr.mxu0 0.0
        %696 = vmatpush1.msra.mxu0 0.0
        %697 = vmatprep.subr.mxu0 0.0
        %698 = vmatpush1.msra.mxu0 0.0
        %699 = vmatprep.subr.mxu0 0.0
        %700 = vmatpush1.msra.mxu0 0.0
        %701 = vmatprep.subr.mxu0 0.0
        %702 = vmatpush1.msra.mxu0 0.0
        %703 = vmatprep.subr.mxu0 0.0
        %704 = vmatpush1.msra.mxu0 0.0
        %705 = vmatprep.subr.mxu0 0.0
        %706 = vmatpush1.msra.mxu0 0.0
        %707 = vmatprep.subr.mxu0 0.0
        %708 = vmatpush1.msra.mxu0 0.0
        %709 = vmatprep.subr.mxu0 0.0
        %710 = vmatpush1.msra.mxu0 0.0
        %711 = vmatprep.subr.mxu0 0.0
        %712 = vmatpush1.msra.mxu0 0.0
        %713 = vmatprep.subr.mxu0 0.0
        %714 = vmatpush1.msra.mxu0 0.0
        %715 = vmatprep.subr.mxu0 0.0
        %716 = vmatpush1.msra.mxu0 0.0
        %717 = vmatprep.subr.mxu0 0.0
        %718 = vmatpush1.msra.mxu0 0.0
        %719 = vmatprep.subr.mxu0 0.0
        %720 = vmatpush1.msra.mxu0 0.0
        %721 = vmatprep.subr.mxu0 0.0
        %722 = vmatpush1.msra.mxu0 0.0
        %723 = vmatprep.subr.mxu0 0.0
        %724 = vmatpush1.msra.mxu0 0.0
        %725 = vmatprep.subr.mxu0 0.0
        %726 = vmatpush1.msra.mxu0 0.0
        %727 = vmatprep.subr.mxu0 0.0
        %728 = vmatpush1.msra.mxu0 0.0
        %729 = vmatprep.subr.mxu0 0.0
        %730 = vmatpush1.msra.mxu0 0.0
        %731 = vmatprep.subr.mxu0 0.0
        %732 = vmatpush1.msra.mxu0 0.0
        %733 = vmatprep.subr.mxu0 0.0
        %734 = vmatpush1.msra.mxu0 0.0
        %735 = vmatprep.subr.mxu0 0.0
        %736 = vmatpush1.msra.mxu0 0.0
        %737 = vmatprep.subr.mxu0 0.0
        %738 = vmatpush1.msra.mxu0 0.0
        %739 = vmatprep.subr.mxu0 0.0
        %740 = vmatpush1.msra.mxu0 0.0
        %741 = vmatprep.subr.mxu0 0.0
        %742 = vmatpush1.msra.mxu0 0.0
        %743 = vmatprep.subr.mxu0 0.0
        %744 = vmatpush1.msra.mxu0 0.0
        %745 = vmatprep.mubr.f32.mxu0 0.0
        %746 = vmatmul.mubr.f32.gmra.mrb[0].mxu0 %v676
        %v747 = vpop.f32.mrb[0].mxu0
        %v748 = vadd.f32 %v667, %v747
        %v749 = vpop.f32.mrb[0].mxu0
        %750 = vmatprep.mubr.f32.mxu0 0.0
        %751 = vmatmul.mubr.f32.gmra.mrb[0].mxu0 %v679
        %v752 = vpop.f32.mrb[0].mxu0
        %v753 = vadd.f32 %v672, %v752
        %v754 = vpop.f32.mrb[0].mxu0
        %755 = vdwg.mxu0
        %vm756 = vcmp.ge.f32.partialorder %v748, 0.0
        %vm757 = vcmp.ge.f32.partialorder %v753, 0.0
        %v758 = vmul.f32 %v748, 0.001
        %v759 = vmul.f32 %v753, 0.001
        %v760 = vsel %vm756, %v748, %v758
        %v761 = vsel %vm757, %v753, %v759
        %v762 = vld [vmem:[%s7] sm:$0xff]
        %v763 = vld [vmem:[%s7 + $0x8] sm:$0xff]
        %765 = vset.pattern.permute.xlu0 0
        %766 = vperm.xlu0 %765, %v762
        %v767 = vpop.permute.xlu0 %766
        %770 = vset.pattern.permute.xlu0 0
        %771 = vperm.xlu0 %770, %v763
        %v772 = vpop.permute.xlu0 %771
        %v774 = vmul.f32 %v767, %v760
        %v775 = vmul.f32 %v772, %v761
        %v776 = vadd.f32 %v774, %v775
        %v777 = vrot.slane %v776, 4
        %v778 = vadd.f32 %v776, %v777
        %v779 = vrot.slane %v778, 2
        %v780 = vadd.f32 %v778, %v779
        %v781 = vrot.slane %v780, 1
        %v782 = vadd.f32 %v780, %v781
        %v783 = vld [vmem:[#allocation2] sm:$0x1]
        %785 = vset.pattern.permute.xlu0 0
        %786 = vperm.xlu0 %785, %v783
        %v787 = vpop.permute.xlu0 %786
        %v789 = vlaneseq
        %v790 = vshrl.u32 %v789, 7
        %v791 = vsub.s32 0, %v790
        %v792 = vrot.slane %v787, %v791
        %v793 = vadd.f32 %v782, %v792
        %v794 = vsub.f32 0.0, %v793
        %v795 = vmul.f32 %v794, 1.442695
        %v796 = vpow.pop %v795
        %v797 = vadd.f32 %v796, 1.0
        %v798 = vrcp.pop %v797
        %799 = vst [vmem:[%s324] sm:$0x1] %v798
        %s800 = sand.u32 %s227, 1
        %s801 = scalar_lea.sflag [#allocation4], %s800
        %s802 = sand.u32 %s227, 1
        %s803 = scalar_lea.vmem [#allocation3], %s802
        // Predicated region
        $region57: #{tpu_custom_call.1} parent=55 // pred_check
          %p804 = pneg %p237
        $region58: #{tpu_custom_call.1} parent=55 // pred_check_branch
          %806 = sbr.rel (%p804) target = $region60
        $region59: #{tpu_custom_call.1} parent=55 // pred_region
          %s808 = ssub.s32 16, 16
          %809 = vsyncadd %s801, %s808
          %s810 = smul.addr %s25, 16
          %s811 = scalar_lea.hbm %s9, %s810
          %s813 = sshll.u32 %s803, 4
          %s814 = int_to_ptr.vmem [resolvable:$true] %s813
          %816 = dma.vmem_to_hbm [thread:$0]  %s814, 16, %s811, %s801
        $region60: #{tpu_custom_call.1} parent=55 // pred_fallthru
          _
      $region56: #{tpu_custom_call.1} parent=5 // pred_fallthru
        _
      %p817 = scmp.le.s32.totalorder 2, %s20
      // Predicated region
      $region61: #{tpu_custom_call.1} parent=5 // pred_check
        %p818 = pneg %p817
      $region62: #{tpu_custom_call.1} parent=5 // pred_check_branch
        %820 = sbr.rel (%p818) target = $region64
      $region63: #{tpu_custom_call.1} parent=5 // pred_region
        %s821 = ssub.s32 %s20, 2
        // Predicated region
        $region65: #{tpu_custom_call.1} parent=63 // pred_check
          %p822 = pneg %p243
        $region66: #{tpu_custom_call.1} parent=63 // pred_check_branch
          %824 = sbr.rel (%p822) target = $region68
        $region67: #{tpu_custom_call.1} parent=63 // pred_region
          %s825 = sand.u32 %s228, 1
          %s826 = scalar_lea.sflag [#allocation4], %s825
          %s827 = sand.u32 %s228, 1
          %s828 = scalar_lea.vmem [#allocation3], %s827
          %829 = dma.done %s826, 16
        $region68: #{tpu_custom_call.1} parent=63 // pred_fallthru
          _
      $region64: #{tpu_custom_call.1} parent=5 // pred_fallthru
        _
    $region6: #{tpu_custom_call.1} parent=1 // loop_footer
      %s24 = sadd.s32 1, %s20
    $region7: #{tpu_custom_call.1} parent=1 // loop_footer_branch
      %19 = sbr.rel target = $region3
    $region8: #{tpu_custom_call.1} parent=1 // loop_exit
      _
    %830 = vsyncpa [#allocation4], 1
    %s831 = scalar_lea.sflag [#allocation4], 1
    %832 = vsyncpa %s831, 1

</llo_original>
